<compile_context>
chip_gen: v5e
topology: v5e:2x2
jax: 0.10.0
libtpu: 0.0.40
codegen_flags: <defaults>
</compile_context>

<pallas_src>
import functools

import jax
import jax.numpy as jnp
from jax.experimental import pallas as pl
from jax.experimental.pallas import tpu as pltpu

B = 2             # batch
SEQ_LEN = 32      # L (time steps)
CHANNELS = 128    # N (variables) — lane-dense last dim
KERNEL_SIZE = 25  # configs.moving_avg (odd, as used by series_decomp)


def _series_decomp_kernel(x_ref, res_ref, mov_ref, *, kernel_size):
    bsz, seq_len, n = x_ref.shape
    pad = (kernel_size - 1) // 2

    x = x_ref[...]                      # (bb, L, nb) value; stays register-resident

    if pad == 0:                        # K == 1: moving mean is the identity
        mov_ref[...] = x
        res_ref[...] = jnp.zeros_like(x)
        return

    def shift_down(v, s, fill):
        # result[:, t, :] = v[:, t - s, :] for t >= s; first s rows come from `fill`.
        return jnp.concatenate([fill, v[:, : seq_len - s, :]], axis=1)

    # Inclusive prefix sum over time: ceil(log2(L)) shift+add steps on the value
    # (no scratch VMEM, no K sublane-unaligned reloads).
    cs = x
    shift = 1
    while shift < seq_len:
        cs = cs + shift_down(cs, shift, jnp.zeros((bsz, shift, n), x.dtype))
        shift *= 2

    total = cs[:, seq_len - 1:seq_len, :]                       # (bb, 1, nb)

    # Window sum over the (virtual) replication-padded series:
    #   mov[t]*K = cs[min(t+pad, L-1)] - (cs[t-pad-1] if t-pad-1 >= 0 else 0)
    #              + max(0, pad - t) * x[0] + max(0, t - (L-1-pad)) * x[L-1]
    hi = jnp.concatenate(
        [cs[:, pad:, :], jnp.broadcast_to(total, (bsz, pad, n))], axis=1)
    lo = shift_down(cs, pad + 1, jnp.zeros((bsz, pad + 1, n), x.dtype))

    t_idx = jax.lax.broadcasted_iota(jnp.int32, (bsz, seq_len, n), 1)
    left_cnt = jnp.maximum(pad - t_idx, 0).astype(x.dtype)
    right_cnt = jnp.maximum(t_idx - (seq_len - 1 - pad), 0).astype(x.dtype)

    win = (hi - lo
           + left_cnt * x[:, 0:1, :]
           + right_cnt * x[:, seq_len - 1:seq_len, :])
    mov = win * (1.0 / kernel_size)

    mov_ref[...] = mov
    res_ref[...] = x - mov


def series_decomp(x, kernel_size, *, channel_block=512, target_block_bytes=2 << 20):
    """Pallas series_decomp: returns (res, moving_mean), both [B, L, N]."""
    assert kernel_size % 2 == 1, "series_decomp expects an odd moving-average kernel"
    bsz, seq_len, n = x.shape
    pad = (kernel_size - 1) // 2
    assert pad < seq_len, "replication pad must be shorter than the sequence"

    # Tile over batch and channels only (never the time/conv axis). Channel blocks
    # are multiples of 128 when they split at all; per-block bytes kept modest so
    # double-buffered blocks stay far below the v7x 32 MiB default scoped-VMEM limit.
    nb = channel_block if (n % channel_block == 0) else n
    per_batch_bytes = seq_len * nb * x.dtype.itemsize
    bb = max(1, min(bsz, target_block_bytes // max(per_batch_bytes, 1)))
    while bsz % bb:
        bb -= 1

    grid = (bsz // bb, n // nb)
    block = (bb, seq_len, nb)
    idx = lambda i, j: (i, 0, j)

    kernel = functools.partial(_series_decomp_kernel, kernel_size=kernel_size)
    res, mov = pl.pallas_call(
        kernel,
        grid=grid,
        in_specs=[pl.BlockSpec(block, idx)],
        out_specs=[pl.BlockSpec(block, idx), pl.BlockSpec(block, idx)],
        out_shape=[
            jax.ShapeDtypeStruct((bsz, seq_len, n), x.dtype),
            jax.ShapeDtypeStruct((bsz, seq_len, n), x.dtype),
        ],
        compiler_params=pltpu.CompilerParams(
            dimension_semantics=("parallel", "parallel")),
        cost_estimate=pl.CostEstimate(
            flops=bsz * seq_len * n * kernel_size,
            transcendentals=0,
            bytes_accessed=3 * bsz * seq_len * n * x.dtype.itemsize),
    )(x)
    return res, mov
    # TODO(synk): at production shapes, fuse this kernel with the op consuming
    # (res, mov) — at toy sizes the call is dispatch-overhead-bound.


def series_decomp_ref(x, kernel_size):
    """Pure-JAX reference matching the PyTorch moving_avg/series_decomp."""
    pad = (kernel_size - 1) // 2
    front = jnp.repeat(x[:, 0:1, :], pad, axis=1)
    end = jnp.repeat(x[:, -1:, :], pad, axis=1)
    xp = jnp.concatenate([front, x, end], axis=1)
    L = x.shape[1]
    mov = jnp.mean(
        jnp.stack([xp[:, i:i + L, :] for i in range(kernel_size)], axis=0), axis=0
    )
    return x - mov, mov


if __name__ == "__main__":
    key = jax.random.PRNGKey(0)
    x = jax.random.normal(key, (B, SEQ_LEN, CHANNELS), jnp.float32)

    fwd = jax.jit(functools.partial(series_decomp, kernel_size=KERNEL_SIZE))
    res, mov = jax.block_until_ready(fwd(x))

    assert res.shape == (B, SEQ_LEN, CHANNELS), res.shape
    assert mov.shape == (B, SEQ_LEN, CHANNELS), mov.shape
    assert bool(jnp.all(jnp.isfinite(res))) and bool(jnp.all(jnp.isfinite(mov)))

    res_ref, mov_ref = series_decomp_ref(x, KERNEL_SIZE)
    assert jnp.allclose(mov, mov_ref, rtol=1e-5, atol=1e-5)
    assert jnp.allclose(res, res_ref, rtol=1e-5, atol=1e-5)

    print("KERNEL_OK")
</pallas_src>

<mosaic_0001>
module attributes {stable_mosaic.version = 11 : i64} {
  func.func @_series_decomp_kernel(%arg0: i32, %arg1: i32, %arg2: memref<2x32x128xf32, #tpu.memory_space<vmem>>, %arg3: memref<2x32x128xf32, #tpu.memory_space<vmem>>, %arg4: memref<2x32x128xf32, #tpu.memory_space<vmem>>) attributes {dimension_semantics = [#tpu.dimension_semantics<parallel>, #tpu.dimension_semantics<parallel>], iteration_bounds = array<i64: 1, 1>, scalar_prefetch = 0 : i64, scratch_operands = 0 : i64, tpu.core_type = #tpu.core_type<tc>, window_params = [{transform_indices = @transform_0, window_bounds = array<i64: 2, 32, 128>}, {transform_indices = @transform_1, window_bounds = array<i64: 2, 32, 128>}, {transform_indices = @transform_2, window_bounds = array<i64: 2, 32, 128>}]} {
    %c0 = arith.constant 0 : index
    %c0_0 = arith.constant 0 : index
    %c0_1 = arith.constant 0 : index
    %0 = vector.load %arg2[%c0, %c0_0, %c0_1] : memref<2x32x128xf32, #tpu.memory_space<vmem>>, vector<2x32x128xf32>
    %cst = arith.constant 0.000000e+00 : f32
    %1 = vector.broadcast %cst : f32 to vector<2x1x128xf32>
    %2 = vector.extract_strided_slice %0 {offsets = [0, 0, 0], sizes = [2, 31, 128], strides = [1, 1, 1]} : vector<2x32x128xf32> to vector<2x31x128xf32>
    %3 = tpu.concatenate %1, %2 in 1 : vector<2x1x128xf32>, vector<2x31x128xf32> -> vector<2x32x128xf32>
    %4 = arith.addf %0, %3 : vector<2x32x128xf32>
    %cst_2 = arith.constant 0.000000e+00 : f32
    %5 = vector.broadcast %cst_2 : f32 to vector<2x2x128xf32>
    %6 = vector.extract_strided_slice %4 {offsets = [0, 0, 0], sizes = [2, 30, 128], strides = [1, 1, 1]} : vector<2x32x128xf32> to vector<2x30x128xf32>
    %7 = tpu.concatenate %5, %6 in 1 : vector<2x2x128xf32>, vector<2x30x128xf32> -> vector<2x32x128xf32>
    %8 = arith.addf %4, %7 : vector<2x32x128xf32>
    %cst_3 = arith.constant 0.000000e+00 : f32
    %9 = vector.broadcast %cst_3 : f32 to vector<2x4x128xf32>
    %10 = vector.extract_strided_slice %8 {offsets = [0, 0, 0], sizes = [2, 28, 128], strides = [1, 1, 1]} : vector<2x32x128xf32> to vector<2x28x128xf32>
    %11 = tpu.concatenate %9, %10 in 1 : vector<2x4x128xf32>, vector<2x28x128xf32> -> vector<2x32x128xf32>
    %12 = arith.addf %8, %11 : vector<2x32x128xf32>
    %cst_4 = arith.constant 0.000000e+00 : f32
    %13 = vector.broadcast %cst_4 : f32 to vector<2x8x128xf32>
    %14 = vector.extract_strided_slice %12 {offsets = [0, 0, 0], sizes = [2, 24, 128], strides = [1, 1, 1]} : vector<2x32x128xf32> to vector<2x24x128xf32>
    %15 = tpu.concatenate %13, %14 in 1 : vector<2x8x128xf32>, vector<2x24x128xf32> -> vector<2x32x128xf32>
    %16 = arith.addf %12, %15 : vector<2x32x128xf32>
    %cst_5 = arith.constant 0.000000e+00 : f32
    %17 = vector.broadcast %cst_5 : f32 to vector<2x16x128xf32>
    %18 = vector.extract_strided_slice %16 {offsets = [0, 0, 0], sizes = [2, 16, 128], strides = [1, 1, 1]} : vector<2x32x128xf32> to vector<2x16x128xf32>
    %19 = tpu.concatenate %17, %18 in 1 : vector<2x16x128xf32>, vector<2x16x128xf32> -> vector<2x32x128xf32>
    %20 = arith.addf %16, %19 : vector<2x32x128xf32>
    %21 = vector.extract_strided_slice %20 {offsets = [0, 31, 0], sizes = [2, 1, 128], strides = [1, 1, 1]} : vector<2x32x128xf32> to vector<2x1x128xf32>
    %22 = vector.extract_strided_slice %20 {offsets = [0, 12, 0], sizes = [2, 20, 128], strides = [1, 1, 1]} : vector<2x32x128xf32> to vector<2x20x128xf32>
    %23 = vector.shape_cast %21 : vector<2x1x128xf32> to vector<2x1x128xf32>
    %24 = vector.broadcast %23 : vector<2x1x128xf32> to vector<2x12x128xf32>
    %25 = tpu.concatenate %22, %24 in 1 : vector<2x20x128xf32>, vector<2x12x128xf32> -> vector<2x32x128xf32>
    %cst_6 = arith.constant 0.000000e+00 : f32
    %26 = vector.broadcast %cst_6 : f32 to vector<2x13x128xf32>
    %27 = vector.extract_strided_slice %20 {offsets = [0, 0, 0], sizes = [2, 19, 128], strides = [1, 1, 1]} : vector<2x32x128xf32> to vector<2x19x128xf32>
    %28 = tpu.concatenate %26, %27 in 1 : vector<2x13x128xf32>, vector<2x19x128xf32> -> vector<2x32x128xf32>
    %29 = tpu.iota {dimensions = array<i32: 1>} : vector<2x32x128xi32>
    %c12_i32 = arith.constant 12 : i32
    %30 = vector.broadcast %c12_i32 : i32 to vector<2x32x128xi32>
    %31 = arith.subi %30, %29 : vector<2x32x128xi32>
    %c0_i32 = arith.constant 0 : i32
    %32 = vector.broadcast %c0_i32 : i32 to vector<2x32x128xi32>
    %33 = arith.maxsi %31, %32 : vector<2x32x128xi32>
    %34 = arith.sitofp %33 : vector<2x32x128xi32> to vector<2x32x128xf32>
    %c19_i32 = arith.constant 19 : i32
    %35 = vector.broadcast %c19_i32 : i32 to vector<2x32x128xi32>
    %36 = arith.subi %29, %35 : vector<2x32x128xi32>
    %c0_i32_7 = arith.constant 0 : i32
    %37 = vector.broadcast %c0_i32_7 : i32 to vector<2x32x128xi32>
    %38 = arith.maxsi %36, %37 : vector<2x32x128xi32>
    %39 = arith.sitofp %38 : vector<2x32x128xi32> to vector<2x32x128xf32>
    %40 = arith.subf %25, %28 : vector<2x32x128xf32>
    %41 = vector.extract_strided_slice %0 {offsets = [0, 0, 0], sizes = [2, 1, 128], strides = [1, 1, 1]} : vector<2x32x128xf32> to vector<2x1x128xf32>
    %42 = vector.broadcast %41 : vector<2x1x128xf32> to vector<2x32x128xf32>
    %43 = arith.mulf %34, %42 : vector<2x32x128xf32>
    %44 = arith.addf %40, %43 : vector<2x32x128xf32>
    %45 = vector.extract_strided_slice %0 {offsets = [0, 31, 0], sizes = [2, 1, 128], strides = [1, 1, 1]} : vector<2x32x128xf32> to vector<2x1x128xf32>
    %46 = vector.broadcast %45 : vector<2x1x128xf32> to vector<2x32x128xf32>
    %47 = arith.mulf %39, %46 : vector<2x32x128xf32>
    %48 = arith.addf %44, %47 : vector<2x32x128xf32>
    %cst_8 = arith.constant 4.000000e-02 : f32
    %49 = vector.broadcast %cst_8 : f32 to vector<2x32x128xf32>
    %50 = arith.mulf %48, %49 : vector<2x32x128xf32>
    %c0_9 = arith.constant 0 : index
    %c0_10 = arith.constant 0 : index
    %c0_11 = arith.constant 0 : index
    %51 = vector.load %arg4[%c0_9, %c0_10, %c0_11] : memref<2x32x128xf32, #tpu.memory_space<vmem>>, vector<2x32x128xf32>
    tpu.vector_store %arg4[%c0_9, %c0_10, %c0_11], %50 {strides = array<i32>} : memref<2x32x128xf32, #tpu.memory_space<vmem>>, vector<2x32x128xf32>,
    %52 = arith.subf %0, %50 : vector<2x32x128xf32>
    %c0_12 = arith.constant 0 : index
    %c0_13 = arith.constant 0 : index
    %c0_14 = arith.constant 0 : index
    %53 = vector.load %arg3[%c0_12, %c0_13, %c0_14] : memref<2x32x128xf32, #tpu.memory_space<vmem>>, vector<2x32x128xf32>
    tpu.vector_store %arg3[%c0_12, %c0_13, %c0_14], %52 {strides = array<i32>} : memref<2x32x128xf32, #tpu.memory_space<vmem>>, vector<2x32x128xf32>,
    return
  }
  func.func @transform_0(%arg0: i32, %arg1: i32) -> (i32, i32, i32) {
    %c0_i32 = arith.constant 0 : i32
    %c0_i32_0 = arith.constant 0 : i32
    return %arg0, %c0_i32, %arg1 : i32, i32, i32
  }
  func.func @transform_1(%arg0: i32, %arg1: i32) -> (i32, i32, i32) {
    %c0_i32 = arith.constant 0 : i32
    %c0_i32_0 = arith.constant 0 : i32
    return %arg0, %c0_i32, %arg1 : i32, i32, i32
  }
  func.func @transform_2(%arg0: i32, %arg1: i32) -> (i32, i32, i32) {
    %c0_i32 = arith.constant 0 : i32
    %c0_i32_0 = arith.constant 0 : i32
    return %arg0, %c0_i32, %arg1 : i32, i32, i32
  }
}

</mosaic_0001>

<llo_original>
// kernel: series_decomp.1
$region0: #{series_decomp.1}
  #allocation0 [shape = 'u32[]', space=smem, size = 0x4, offset = 0x4, fixed_abs, tag = 'smem constant byte address 0x4 - core index']
  #allocation1 [shape = 'u32[72,128]{1,0:T(1,128)}', space=vmem, size = 0x9000, scoped, tag = 'internal scratch']
  %s0 = inlined_call_operand.hbm [shape: f32[2,32,128], index: 0, kind: input, shape index: {}]
  %s1 = inlined_call_operand.hbm [shape: f32[2,32,128], index: 1, kind: output, shape index: {0}]
  %s2 = inlined_call_operand.hbm [shape: f32[2,32,128], index: 2, kind: output, shape index: {1}]
  %3 = xla_tuple %s1, %s2
  %s4 = sld [smem:[#allocation0]]
  $region26: #{series_decomp.1} parent=0
    _
  %s6 = ssub.s32 1, %s4
  %s7 = scalar_select 0, %s6, %s4
  $region1: #{series_decomp.1} parent=0
    #allocation2 [shape = 'u8[32768]{0}', space=vmem, size = 0x8000, scoped, tag = 'input window, operand 0, single buffered']
    #allocation3 [shape = 's32[1]{0}', space=sflag, size = 0x4, scoped, tag = 'scoped memory for series_decomp.1']
    #allocation4 [shape = 's32[1]{0}', space=sflag, size = 0x4, scoped, tag = 'scoped memory for series_decomp.1']
    #allocation5 [shape = 'u8[32768]{0}', space=vmem, size = 0x8000, scoped, tag = 'output window, operand 0, single buffered']
    #allocation6 [shape = 'u8[32768]{0}', space=vmem, size = 0x8000, scoped, tag = 'output window, operand 1, single buffered']
    #allocation7 [shape = 's32[1]{0}', space=sflag, size = 0x4, scoped, tag = 'scoped memory for series_decomp.1']
    %8 = vsyncpa [#allocation3], 0
    %9 = vsyncpa [#allocation4], 0
    %10 = vsyncpa [#allocation7], 0
    // Predicated region
    $region2: #{series_decomp.1} parent=1 // pred_check
      _
    $region3: #{series_decomp.1} parent=1 // pred_check_branch
      %12 = sbr.rel (0) target = $region5
    $region4: #{series_decomp.1} parent=1 // pred_region
      %14 = vsyncadd [#allocation3], 0
      %s15 = sshll.u32 %s0, 4
      %s16 = int_to_ptr.hbm [resolvable:$true] %s15
      %s17 = sshll.u32 [#allocation2], 4
      %s18 = int_to_ptr.vmem [resolvable:$true] %s17
      %23 = dma.hbm_to_vmem [thread:$0]  %s16, 1024, %s18, [#allocation3], 128, 128, 8
    $region5: #{series_decomp.1} parent=1 // pred_fallthru
      _
    // Predicated region
    $region6: #{series_decomp.1} parent=1 // pred_check
      _
    $region7: #{series_decomp.1} parent=1 // pred_check_branch
      %25 = sbr.rel (0) target = $region9
    $region8: #{series_decomp.1} parent=1 // pred_region
      %27 = dma.done [#allocation3], 1024
    $region9: #{series_decomp.1} parent=1 // pred_fallthru
      _
    %v28 = vld [vmem:[#allocation2] sm:$0xff]
    %v29 = vld [vmem:[#allocation2 + $0x8] sm:$0xff]
    %v30 = vld [vmem:[#allocation2 + $0x10] sm:$0xff]
    %v31 = vld [vmem:[#allocation2 + $0x18] sm:$0xff]
    %v32 = vld [vmem:[#allocation2 + $0x20] sm:$0xff]
    %v33 = vld [vmem:[#allocation2 + $0x28] sm:$0xff]
    %v34 = vld [vmem:[#allocation2 + $0x30] sm:$0xff]
    %v35 = vld [vmem:[#allocation2 + $0x38] sm:$0xff]
    %vm44 = vcmask 1040384
    %v45 = vrot.slane %v28, 7
    %v46 = vrot.slane %v29, 7
    %v47 = vsel %vm44, %v45, %v46
    %v48 = vrot.slane %v30, 7
    %v49 = vsel %vm44, %v46, %v48
    %v50 = vrot.slane %v31, 7
    %v51 = vsel %vm44, %v48, %v50
    %v52 = vrot.slane %v32, 7
    %v53 = vrot.slane %v33, 7
    %v54 = vsel %vm44, %v52, %v53
    %v55 = vrot.slane %v34, 7
    %v56 = vsel %vm44, %v53, %v55
    %v57 = vrot.slane %v35, 7
    %v58 = vsel %vm44, %v55, %v57
    %v67 = vsel %vm44, 0.0, %v45
    %v68 = vsel %vm44, 0.0, %v52
    %v69 = vadd.f32 %v28, %v67
    %v70 = vadd.f32 %v29, %v47
    %v71 = vadd.f32 %v30, %v49
    %v72 = vadd.f32 %v31, %v51
    %v73 = vadd.f32 %v32, %v68
    %v74 = vadd.f32 %v33, %v54
    %v75 = vadd.f32 %v34, %v56
    %v76 = vadd.f32 %v35, %v58
    %vm85 = vcmask 1041408
    %v86 = vrot.slane %v69, 6
    %v87 = vrot.slane %v70, 6
    %v88 = vsel %vm85, %v86, %v87
    %v89 = vrot.slane %v71, 6
    %v90 = vsel %vm85, %v87, %v89
    %v91 = vrot.slane %v72, 6
    %v92 = vsel %vm85, %v89, %v91
    %v93 = vrot.slane %v73, 6
    %v94 = vrot.slane %v74, 6
    %v95 = vsel %vm85, %v93, %v94
    %v96 = vrot.slane %v75, 6
    %v97 = vsel %vm85, %v94, %v96
    %v98 = vrot.slane %v76, 6
    %v99 = vsel %vm85, %v96, %v98
    %v108 = vsel %vm85, 0.0, %v86
    %v109 = vsel %vm85, 0.0, %v93
    %v110 = vadd.f32 %v69, %v108
    %v111 = vadd.f32 %v70, %v88
    %v112 = vadd.f32 %v71, %v90
    %v113 = vadd.f32 %v72, %v92
    %v114 = vadd.f32 %v73, %v109
    %v115 = vadd.f32 %v74, %v95
    %v116 = vadd.f32 %v75, %v97
    %v117 = vadd.f32 %v76, %v99
    %vm126 = vcmask 1043456
    %v127 = vrot.slane %v110, 4
    %v128 = vrot.slane %v111, 4
    %v129 = vsel %vm126, %v127, %v128
    %v130 = vrot.slane %v112, 4
    %v131 = vsel %vm126, %v128, %v130
    %v132 = vrot.slane %v113, 4
    %v133 = vsel %vm126, %v130, %v132
    %v134 = vrot.slane %v114, 4
    %v135 = vrot.slane %v115, 4
    %v136 = vsel %vm126, %v134, %v135
    %v137 = vrot.slane %v116, 4
    %v138 = vsel %vm126, %v135, %v137
    %v139 = vrot.slane %v117, 4
    %v140 = vsel %vm126, %v137, %v139
    %v149 = vsel %vm126, 0.0, %v127
    %v150 = vsel %vm126, 0.0, %v134
    %v151 = vadd.f32 %v110, %v149
    %v152 = vadd.f32 %v111, %v129
    %v153 = vadd.f32 %v112, %v131
    %v154 = vadd.f32 %v113, %v133
    %v155 = vadd.f32 %v114, %v150
    %v156 = vadd.f32 %v115, %v136
    %v157 = vadd.f32 %v116, %v138
    %v158 = vadd.f32 %v117, %v140
    %v159 = vadd.f32 %v151, 0.0
    %v160 = vadd.f32 %v152, %v151
    %v161 = vadd.f32 %v153, %v152
    %v162 = vadd.f32 %v154, %v153
    %v163 = vadd.f32 %v155, 0.0
    %v164 = vadd.f32 %v156, %v155
    %v165 = vadd.f32 %v157, %v156
    %v166 = vadd.f32 %v158, %v157
    %v167 = vadd.f32 %v159, 0.0
    %v168 = vadd.f32 %v160, 0.0
    %v169 = vadd.f32 %v161, %v159
    %v170 = vadd.f32 %v162, %v160
    %v171 = vadd.f32 %v163, 0.0
    %v172 = vadd.f32 %v164, 0.0
    %v173 = vadd.f32 %v165, %v163
    %v174 = vadd.f32 %v166, %v164
    %v175 = vperm.slane %v170, 7
    %v176 = vperm.slane %v174, 7
    %v183 = vrot.slane %v168, 4
    %v184 = vrot.slane %v169, 4
    %v185 = vsel %vm126, %v183, %v184
    %v186 = vrot.slane %v170, 4
    %v187 = vsel %vm126, %v184, %v186
    %v188 = vrot.slane %v172, 4
    %v189 = vrot.slane %v173, 4
    %v190 = vsel %vm126, %v188, %v189
    %v191 = vrot.slane %v174, 4
    %v192 = vsel %vm126, %v189, %v191
    %v199 = vsel %vm126, %v186, %v175
    %v200 = vsel %vm126, %v191, %v176
    %vm203 = vcmask 1044480
    %v204 = vrot.slane %v167, 3
    %v205 = vrot.slane %v168, 3
    %v206 = vsel %vm203, %v204, %v205
    %v207 = vrot.slane %v169, 3
    %v208 = vsel %vm203, %v205, %v207
    %v209 = vrot.slane %v171, 3
    %v210 = vrot.slane %v172, 3
    %v211 = vsel %vm203, %v209, %v210
    %v212 = vrot.slane %v173, 3
    %v213 = vsel %vm203, %v210, %v212
    %v220 = vsel %vm203, 0.0, %v204
    %v221 = vsel %vm203, 0.0, %v209
    %v222 = vlaneseq
    %v223 = vshrl.u32 %v222, 7
    %v224 = vadd.s32 %v223, 8
    %v225 = vadd.s32 %v223, 16
    %v226 = vadd.s32 %v223, 24
    %v227 = vsub.s32 12, %v223
    %v228 = vsub.s32 12, %v224
    %v229 = vsub.s32 12, %v225
    %v230 = vsub.s32 12, %v226
    %vm231 = vcmp.gt.s32.totalorder %v227, 0
    %v232 = vsel %vm231, %v227, 0
    %vm233 = vcmp.gt.s32.totalorder %v228, 0
    %v234 = vsel %vm233, %v228, 0
    %vm235 = vcmp.gt.s32.totalorder %v229, 0
    %v236 = vsel %vm235, %v229, 0
    %vm237 = vcmp.gt.s32.totalorder %v230, 0
    %v238 = vsel %vm237, %v230, 0
    %v239 = vcvt.s32.f32 %v232
    %v240 = vcvt.s32.f32 %v234
    %v241 = vcvt.s32.f32 %v236
    %v242 = vcvt.s32.f32 %v238
    %v243 = vsub.s32 %v223, 19
    %v244 = vsub.s32 %v224, 19
    %v245 = vsub.s32 %v225, 19
    %v246 = vsub.s32 %v226, 19
    %vm247 = vcmp.gt.s32.totalorder %v243, 0
    %v248 = vsel %vm247, %v243, 0
    %vm249 = vcmp.gt.s32.totalorder %v244, 0
    %v250 = vsel %vm249, %v244, 0
    %vm251 = vcmp.gt.s32.totalorder %v245, 0
    %v252 = vsel %vm251, %v245, 0
    %vm253 = vcmp.gt.s32.totalorder %v246, 0
    %v254 = vsel %vm253, %v246, 0
    %v255 = vcvt.s32.f32 %v248
    %v256 = vcvt.s32.f32 %v250
    %v257 = vcvt.s32.f32 %v252
    %v258 = vcvt.s32.f32 %v254
    %v259 = vsub.f32 %v187, %v220
    %v260 = vsub.f32 %v199, %v206
    %v261 = vsub.f32 %v175, %v208
    %v262 = vsub.f32 %v192, %v221
    %v263 = vsub.f32 %v200, %v211
    %v264 = vsub.f32 %v176, %v213
    %v265 = vperm.slane %v28, 0
    %v266 = vperm.slane %v32, 0
    %v267 = vmul.f32 %v239, %v265
    %v268 = vmul.f32 %v240, %v265
    %v269 = vmul.f32 %v241, %v265
    %v270 = vmul.f32 %v242, %v265
    %v271 = vmul.f32 %v239, %v266
    %v272 = vmul.f32 %v240, %v266
    %v273 = vmul.f32 %v241, %v266
    %v274 = vmul.f32 %v242, %v266
    %v275 = vadd.f32 %v185, %v267
    %v276 = vadd.f32 %v259, %v268
    %v277 = vadd.f32 %v260, %v269
    %v278 = vadd.f32 %v261, %v270
    %v279 = vadd.f32 %v190, %v271
    %v280 = vadd.f32 %v262, %v272
    %v281 = vadd.f32 %v263, %v273
    %v282 = vadd.f32 %v264, %v274
    %v283 = vperm.slane %v31, 7
    %v284 = vperm.slane %v35, 7
    %v285 = vmul.f32 %v255, %v283
    %v286 = vmul.f32 %v256, %v283
    %v287 = vmul.f32 %v257, %v283
    %v288 = vmul.f32 %v258, %v283
    %v289 = vmul.f32 %v255, %v284
    %v290 = vmul.f32 %v256, %v284
    %v291 = vmul.f32 %v257, %v284
    %v292 = vmul.f32 %v258, %v284
    %v293 = vadd.f32 %v275, %v285
    %v294 = vadd.f32 %v276, %v286
    %v295 = vadd.f32 %v277, %v287
    %v296 = vadd.f32 %v278, %v288
    %v297 = vadd.f32 %v279, %v289
    %v298 = vadd.f32 %v280, %v290
    %v299 = vadd.f32 %v281, %v291
    %v300 = vadd.f32 %v282, %v292
    %v301 = vmul.f32 %v293, 0.04
    %v302 = vmul.f32 %v294, 0.04
    %v303 = vmul.f32 %v295, 0.04
    %v304 = vmul.f32 %v296, 0.04
    %v305 = vmul.f32 %v297, 0.04
    %v306 = vmul.f32 %v298, 0.04
    %v307 = vmul.f32 %v299, 0.04
    %v308 = vmul.f32 %v300, 0.04
    %309 = vst [vmem:[#allocation6] sm:$0xff] %v301
    %310 = vst [vmem:[#allocation6 + $0x8] sm:$0xff] %v302
    %311 = vst [vmem:[#allocation6 + $0x10] sm:$0xff] %v303
    %312 = vst [vmem:[#allocation6 + $0x18] sm:$0xff] %v304
    %313 = vst [vmem:[#allocation6 + $0x20] sm:$0xff] %v305
    %314 = vst [vmem:[#allocation6 + $0x28] sm:$0xff] %v306
    %315 = vst [vmem:[#allocation6 + $0x30] sm:$0xff] %v307
    %316 = vst [vmem:[#allocation6 + $0x38] sm:$0xff] %v308
    %v317 = vsub.f32 %v28, %v301
    %v318 = vsub.f32 %v29, %v302
    %v319 = vsub.f32 %v30, %v303
    %v320 = vsub.f32 %v31, %v304
    %v321 = vsub.f32 %v32, %v305
    %v322 = vsub.f32 %v33, %v306
    %v323 = vsub.f32 %v34, %v307
    %v324 = vsub.f32 %v35, %v308
    %325 = vst [vmem:[#allocation5] sm:$0xff] %v317
    %326 = vst [vmem:[#allocation5 + $0x8] sm:$0xff] %v318
    %327 = vst [vmem:[#allocation5 + $0x10] sm:$0xff] %v319
    %328 = vst [vmem:[#allocation5 + $0x18] sm:$0xff] %v320
    %329 = vst [vmem:[#allocation5 + $0x20] sm:$0xff] %v321
    %330 = vst [vmem:[#allocation5 + $0x28] sm:$0xff] %v322
    %331 = vst [vmem:[#allocation5 + $0x30] sm:$0xff] %v323
    %332 = vst [vmem:[#allocation5 + $0x38] sm:$0xff] %v324
    // Predicated region
    $region10: #{series_decomp.1} parent=1 // pred_check
      _
    $region11: #{series_decomp.1} parent=1 // pred_check_branch
      %334 = sbr.rel (0) target = $region13
    $region12: #{series_decomp.1} parent=1 // pred_region
      %336 = vsyncadd [#allocation4], 0
      %s337 = sshll.u32 [#allocation5], 4
      %s338 = int_to_ptr.vmem [resolvable:$true] %s337
      %s339 = sshll.u32 %s1, 4
      %s340 = int_to_ptr.hbm [resolvable:$true] %s339
      %345 = dma.vmem_to_hbm [thread:$0]  %s338, 1024, %s340, [#allocation4], 128, 128, 8
    $region13: #{series_decomp.1} parent=1 // pred_fallthru
      _
    // Predicated region
    $region14: #{series_decomp.1} parent=1 // pred_check
      _
    $region15: #{series_decomp.1} parent=1 // pred_check_branch
      %347 = sbr.rel (0) target = $region17
    $region16: #{series_decomp.1} parent=1 // pred_region
      %349 = vsyncadd [#allocation7], 0
      %s350 = sshll.u32 [#allocation6], 4
      %s351 = int_to_ptr.vmem [resolvable:$true] %s350
      %s352 = sshll.u32 %s2, 4
      %s353 = int_to_ptr.hbm [resolvable:$true] %s352
      %358 = dma.vmem_to_hbm [thread:$0]  %s351, 1024, %s353, [#allocation7], 128, 128, 8
    $region17: #{series_decomp.1} parent=1 // pred_fallthru
      _
    // Predicated region
    $region18: #{series_decomp.1} parent=1 // pred_check
      _
    $region19: #{series_decomp.1} parent=1 // pred_check_branch
      %360 = sbr.rel (0) target = $region21
    $region20: #{series_decomp.1} parent=1 // pred_region
      %362 = dma.done [#allocation4], 1024
    $region21: #{series_decomp.1} parent=1 // pred_fallthru
      _
    // Predicated region
    $region22: #{series_decomp.1} parent=1 // pred_check
      _
    $region23: #{series_decomp.1} parent=1 // pred_check_branch
      %364 = sbr.rel (0) target = $region25
    $region24: #{series_decomp.1} parent=1 // pred_region
      %366 = dma.done [#allocation7], 1024
    $region25: #{series_decomp.1} parent=1 // pred_fallthru
      _
    %367 = vsyncpa [#allocation3], 1
    %368 = vsyncpa [#allocation4], 1
    %369 = vsyncpa [#allocation7], 1

</llo_original>
